<compile_context>
chip_gen: v5e
topology: v5e:2x2
jax: 0.10.0
libtpu: 0.0.40
codegen_flags: <defaults>
</compile_context>

<pallas_src>
import functools
import math

import jax
import jax.numpy as jnp
from jax.experimental import pallas as pl
from jax.experimental.pallas import tpu as pltpu


LANE = 128  # lane width: hidden/output feature dims are padded to this


def _round_up(n: int, m: int) -> int:
    return ((n + m - 1) // m) * m


def _pick_block_b(batch: int) -> int:
    """Largest batch tile in {512, 256, 128} that still yields >= 2 grid steps
    (so a v7x chip can shard the grid across its 2 TensorCores); falls back to
    128 for small batches."""
    for blk in (512, 256, 128):
        if batch >= 2 * blk:
            return blk
    return 128


def _dqn_kernel(x_ref,
                w1_ref, b1_ref,
                w2_ref, b2_ref,
                w3_ref, b3_ref,
                w4_ref, b4_ref,
                o_ref):
    # Fused 4-layer MLP on one (BLOCK_B, in_dim) batch tile.  Weights/biases
    # use constant index_maps, so they are DMA'd once and stay VMEM-resident
    # across all grid steps.  Matmuls run in bf16 on the MXU with f32
    # accumulation; bias add / ReLU happen in f32 on the VPU.
    wdt = w1_ref.dtype
    x = x_ref[...].astype(wdt)

    h = jnp.dot(x, w1_ref[...], preferred_element_type=jnp.float32) + b1_ref[...]
    h = jnp.maximum(h, 0.0).astype(wdt)

    h = jnp.dot(h, w2_ref[...], preferred_element_type=jnp.float32) + b2_ref[...]
    h = jnp.maximum(h, 0.0).astype(wdt)

    h = jnp.dot(h, w3_ref[...], preferred_element_type=jnp.float32) + b3_ref[...]
    h = jnp.maximum(h, 0.0).astype(wdt)

    o_ref[...] = (
        jnp.dot(h, w4_ref[...], preferred_element_type=jnp.float32) + b4_ref[...]
    )


@functools.partial(jax.jit, static_argnames=("out_dim",))
def dqn_forward(x, params, *, out_dim):
    """x: [B, input_size] float32.
    params: dict of pre-padded bf16 weights w1..w4 ([in, out_padded]) and
    f32 biases b1..b4 ([1, out_padded]) produced by init_dqn_params.
    Returns Q-values [B, out_dim] float32."""
    B, in_dim = x.shape
    hid_p = params["w2"].shape[0]
    out_p = params["w4"].shape[1]

    block_b = _pick_block_b(B)
    B_p = _round_up(B, block_b)
    n_blocks = B_p // block_b

    # Only the batch dim is padded (zero rows are sliced away at the end);
    # x keeps its true (narrow) feature width.
    x_p = jnp.pad(x, ((0, B_p - B), (0, 0))) if B_p != B else x

    def const_spec(a):
        # Weights/biases: one block covering the whole array, same block for
        # every grid step -> resident in VMEM for the whole call.
        return pl.BlockSpec(a.shape, lambda i: (0,) * a.ndim)

    in_specs = [
        pl.BlockSpec((block_b, in_dim), lambda i: (i, 0)),   # streamed per step
        const_spec(params["w1"]), const_spec(params["b1"]),
        const_spec(params["w2"]), const_spec(params["b2"]),
        const_spec(params["w3"]), const_spec(params["b3"]),
        const_spec(params["w4"]), const_spec(params["b4"]),
    ]
    out_spec = pl.BlockSpec((block_b, out_p), lambda i: (i, 0))
    out_shape = jax.ShapeDtypeStruct((B_p, out_p), jnp.float32)

    # Advisory cost estimate from the dims actually executed.
    flops = 2 * B_p * (in_dim * hid_p + 2 * hid_p * hid_p + hid_p * out_p)
    w_bytes = params["w1"].dtype.itemsize
    bytes_accessed = (
        4 * B_p * in_dim                                             # x (f32)
        + w_bytes * (in_dim * hid_p + 2 * hid_p * hid_p + hid_p * out_p)  # bf16 weights
        + 4 * (3 * hid_p + out_p)                                    # f32 biases
        + 4 * B_p * out_p                                            # out (f32)
    )

    out_padded = pl.pallas_call(
        _dqn_kernel,
        out_shape=out_shape,
        grid=(n_blocks,),
        in_specs=in_specs,
        out_specs=out_spec,
        compiler_params=pltpu.CompilerParams(
            dimension_semantics=("parallel",),
        ),
        cost_estimate=pl.CostEstimate(
            flops=flops, transcendentals=0, bytes_accessed=bytes_accessed),
    )(x_p,
      params["w1"], params["b1"],
      params["w2"], params["b2"],
      params["w3"], params["b3"],
      params["w4"], params["b4"])

    # Strip batch + lane padding.  (For a latency-critical deployment, fuse
    # the action argmax into the consumer instead of materializing this slice.)
    return out_padded[:B, :out_dim]


def init_dqn_params(key, input_size, output_size, hidden_size,
                    weight_dtype=jnp.bfloat16):
    """Deterministic synthetic init (Kaiming-uniform-like scaling) matching the
    PyTorch DQN shapes, with weights transposed to [in, out], hidden/output
    dims pre-padded to LANE multiples, weights stored in bf16, biases in f32.
    Zero padding is numerically exact: padded weight rows/cols are zero and
    padded hidden units get bias 0 -> ReLU(0) = 0."""
    hid_p = _round_up(hidden_size, LANE)
    out_p = _round_up(output_size, LANE)
    # (fan_in, fan_out, padded_rows, padded_cols); w1 keeps its true row count
    # because x is not lane-padded.
    layer_dims = [
        (input_size, hidden_size, input_size, hid_p),
        (hidden_size, hidden_size, hid_p, hid_p),
        (hidden_size, hidden_size, hid_p, hid_p),
        (hidden_size, output_size, hid_p, out_p),
    ]
    params = {}
    for i, (fan_in, fan_out, rows_p, cols_p) in enumerate(layer_dims, start=1):
        key, kw, kb = jax.random.split(key, 3)
        bound = 1.0 / math.sqrt(fan_in)
        w = jax.random.uniform(kw, (fan_in, fan_out), jnp.float32, -bound, bound)
        b = jax.random.uniform(kb, (1, fan_out), jnp.float32, -bound, bound)
        params[f"w{i}"] = jnp.pad(
            w, ((0, rows_p - fan_in), (0, cols_p - fan_out))).astype(weight_dtype)
        params[f"b{i}"] = jnp.pad(b, ((0, 0), (0, cols_p - fan_out)))  # f32
    return params


def _reference_forward(x, params, out_dim):
    """Plain-JAX reference mirroring the kernel's bf16-matmul / f32-accumulate
    numerics (weights are already the padded bf16 tensors)."""
    wdt = params["w1"].dtype
    h = x.astype(wdt)
    for i in (1, 2, 3):
        h = jnp.dot(h, params[f"w{i}"], preferred_element_type=jnp.float32) \
            + params[f"b{i}"]
        h = jnp.maximum(h, 0.0).astype(wdt)
    out = jnp.dot(h, params["w4"], preferred_element_type=jnp.float32) \
        + params["b4"]
    return out[:, :out_dim]


if __name__ == "__main__":
    key = jax.random.PRNGKey(0)

    B = 200               # replay-batch size (exercises batch padding -> 2 tiles of 128)
    INPUT_SIZE = 16       # input_tensor_size
    HIDDEN = 128          # hidden_layer_size (small demo value; lane-aligned)
    N_ACTIONS = 4         # output_action_space_size

    kx, kp = jax.random.split(key)
    x = jax.random.normal(kx, (B, INPUT_SIZE), jnp.float32)
    params = init_dqn_params(kp, INPUT_SIZE, N_ACTIONS, HIDDEN)

    out = dqn_forward(x, params, out_dim=N_ACTIONS)
    out = jax.block_until_ready(out)

    ref = _reference_forward(x, params, N_ACTIONS)

    assert out.shape == (B, N_ACTIONS)
    assert jnp.allclose(out, ref, atol=1e-2, rtol=1e-2)

    print("KERNEL_OK")
</pallas_src>

<mosaic_0001>
module attributes {stable_mosaic.version = 11 : i64} {
  func.func @_dqn_kernel(%arg0: i32, %arg1: memref<128x16xf32, #tpu.memory_space<vmem>>, %arg2: memref<16x128xbf16, #tpu.memory_space<vmem>>, %arg3: memref<1x128xf32, #tpu.memory_space<vmem>>, %arg4: memref<128x128xbf16, #tpu.memory_space<vmem>>, %arg5: memref<1x128xf32, #tpu.memory_space<vmem>>, %arg6: memref<128x128xbf16, #tpu.memory_space<vmem>>, %arg7: memref<1x128xf32, #tpu.memory_space<vmem>>, %arg8: memref<128x128xbf16, #tpu.memory_space<vmem>>, %arg9: memref<1x128xf32, #tpu.memory_space<vmem>>, %arg10: memref<128x128xf32, #tpu.memory_space<vmem>>) attributes {dimension_semantics = [#tpu.dimension_semantics<parallel>], iteration_bounds = array<i64: 2>, scalar_prefetch = 0 : i64, scratch_operands = 0 : i64, tpu.core_type = #tpu.core_type<tc>, window_params = [{transform_indices = @transform_0, window_bounds = array<i64: 128, 16>}, {pipeline_mode = #tpu.pipeline_mode<synchronous>, transform_indices = @transform_1, window_bounds = array<i64: 16, 128>}, {pipeline_mode = #tpu.pipeline_mode<synchronous>, transform_indices = @transform_2, window_bounds = array<i64: 1, 128>}, {pipeline_mode = #tpu.pipeline_mode<synchronous>, transform_indices = @transform_3, window_bounds = array<i64: 128, 128>}, {pipeline_mode = #tpu.pipeline_mode<synchronous>, transform_indices = @transform_4, window_bounds = array<i64: 1, 128>}, {pipeline_mode = #tpu.pipeline_mode<synchronous>, transform_indices = @transform_5, window_bounds = array<i64: 128, 128>}, {pipeline_mode = #tpu.pipeline_mode<synchronous>, transform_indices = @transform_6, window_bounds = array<i64: 1, 128>}, {pipeline_mode = #tpu.pipeline_mode<synchronous>, transform_indices = @transform_7, window_bounds = array<i64: 128, 128>}, {pipeline_mode = #tpu.pipeline_mode<synchronous>, transform_indices = @transform_8, window_bounds = array<i64: 1, 128>}, {transform_indices = @transform_9, window_bounds = array<i64: 128, 128>}]} {
    %c0 = arith.constant 0 : index
    %c0_0 = arith.constant 0 : index
    %0 = vector.load %arg1[%c0, %c0_0] : memref<128x16xf32, #tpu.memory_space<vmem>>, vector<128x16xf32>
    %1 = arith.truncf %0 : vector<128x16xf32> to vector<128x16xbf16>
    %c0_1 = arith.constant 0 : index
    %c0_2 = arith.constant 0 : index
    %2 = vector.load %arg2[%c0_1, %c0_2] : memref<16x128xbf16, #tpu.memory_space<vmem>>, vector<16x128xbf16>
    %cst = arith.constant dense<0.000000e+00> : vector<128x128xf32>
    %3 = tpu.matmul %1, %2, %cst {dimension_numbers = #tpu.dot_dimension_numbers<[1], [0], [0], [1], [0, 0, 1, 1], [], []>} : vector<128x16xbf16>, vector<16x128xbf16>, vector<128x128xf32> -> vector<128x128xf32>
    %c0_3 = arith.constant 0 : index
    %c0_4 = arith.constant 0 : index
    %4 = vector.load %arg3[%c0_3, %c0_4] : memref<1x128xf32, #tpu.memory_space<vmem>>, vector<1x128xf32>
    %5 = vector.broadcast %4 : vector<1x128xf32> to vector<128x128xf32>
    %6 = arith.addf %3, %5 : vector<128x128xf32>
    %cst_5 = arith.constant 0.000000e+00 : f32
    %7 = vector.broadcast %cst_5 : f32 to vector<128x128xf32>
    %8 = arith.maximumf %6, %7 : vector<128x128xf32>
    %9 = arith.truncf %8 : vector<128x128xf32> to vector<128x128xbf16>
    %c0_6 = arith.constant 0 : index
    %c0_7 = arith.constant 0 : index
    %10 = vector.load %arg4[%c0_6, %c0_7] : memref<128x128xbf16, #tpu.memory_space<vmem>>, vector<128x128xbf16>
    %cst_8 = arith.constant dense<0.000000e+00> : vector<128x128xf32>
    %11 = tpu.matmul %9, %10, %cst_8 {dimension_numbers = #tpu.dot_dimension_numbers<[1], [0], [0], [1], [0, 0, 1, 1], [], []>} : vector<128x128xbf16>, vector<128x128xbf16>, vector<128x128xf32> -> vector<128x128xf32>
    %c0_9 = arith.constant 0 : index
    %c0_10 = arith.constant 0 : index
    %12 = vector.load %arg5[%c0_9, %c0_10] : memref<1x128xf32, #tpu.memory_space<vmem>>, vector<1x128xf32>
    %13 = vector.broadcast %12 : vector<1x128xf32> to vector<128x128xf32>
    %14 = arith.addf %11, %13 : vector<128x128xf32>
    %cst_11 = arith.constant 0.000000e+00 : f32
    %15 = vector.broadcast %cst_11 : f32 to vector<128x128xf32>
    %16 = arith.maximumf %14, %15 : vector<128x128xf32>
    %17 = arith.truncf %16 : vector<128x128xf32> to vector<128x128xbf16>
    %c0_12 = arith.constant 0 : index
    %c0_13 = arith.constant 0 : index
    %18 = vector.load %arg6[%c0_12, %c0_13] : memref<128x128xbf16, #tpu.memory_space<vmem>>, vector<128x128xbf16>
    %cst_14 = arith.constant dense<0.000000e+00> : vector<128x128xf32>
    %19 = tpu.matmul %17, %18, %cst_14 {dimension_numbers = #tpu.dot_dimension_numbers<[1], [0], [0], [1], [0, 0, 1, 1], [], []>} : vector<128x128xbf16>, vector<128x128xbf16>, vector<128x128xf32> -> vector<128x128xf32>
    %c0_15 = arith.constant 0 : index
    %c0_16 = arith.constant 0 : index
    %20 = vector.load %arg7[%c0_15, %c0_16] : memref<1x128xf32, #tpu.memory_space<vmem>>, vector<1x128xf32>
    %21 = vector.broadcast %20 : vector<1x128xf32> to vector<128x128xf32>
    %22 = arith.addf %19, %21 : vector<128x128xf32>
    %cst_17 = arith.constant 0.000000e+00 : f32
    %23 = vector.broadcast %cst_17 : f32 to vector<128x128xf32>
    %24 = arith.maximumf %22, %23 : vector<128x128xf32>
    %25 = arith.truncf %24 : vector<128x128xf32> to vector<128x128xbf16>
    %c0_18 = arith.constant 0 : index
    %c0_19 = arith.constant 0 : index
    %26 = vector.load %arg8[%c0_18, %c0_19] : memref<128x128xbf16, #tpu.memory_space<vmem>>, vector<128x128xbf16>
    %cst_20 = arith.constant dense<0.000000e+00> : vector<128x128xf32>
    %27 = tpu.matmul %25, %26, %cst_20 {dimension_numbers = #tpu.dot_dimension_numbers<[1], [0], [0], [1], [0, 0, 1, 1], [], []>} : vector<128x128xbf16>, vector<128x128xbf16>, vector<128x128xf32> -> vector<128x128xf32>
    %c0_21 = arith.constant 0 : index
    %c0_22 = arith.constant 0 : index
    %28 = vector.load %arg9[%c0_21, %c0_22] : memref<1x128xf32, #tpu.memory_space<vmem>>, vector<1x128xf32>
    %29 = vector.broadcast %28 : vector<1x128xf32> to vector<128x128xf32>
    %30 = arith.addf %27, %29 : vector<128x128xf32>
    %c0_23 = arith.constant 0 : index
    %c0_24 = arith.constant 0 : index
    %31 = vector.load %arg10[%c0_23, %c0_24] : memref<128x128xf32, #tpu.memory_space<vmem>>, vector<128x128xf32>
    tpu.vector_store %arg10[%c0_23, %c0_24], %30 {strides = array<i32>} : memref<128x128xf32, #tpu.memory_space<vmem>>, vector<128x128xf32>,
    return
  }
  func.func @transform_0(%arg0: i32) -> (i32, i32) {
    %c0_i32 = arith.constant 0 : i32
    %c0_i32_0 = arith.constant 0 : i32
    return %arg0, %c0_i32 : i32, i32
  }
  func.func @transform_1(%arg0: i32) -> (i32, i32) {
    %c0_i32 = arith.constant 0 : i32
    %c0_i32_0 = arith.constant 0 : i32
    %c0_i32_1 = arith.constant 0 : i32
    return %c0_i32, %c0_i32_0 : i32, i32
  }
  func.func @transform_2(%arg0: i32) -> (i32, i32) {
    %c0_i32 = arith.constant 0 : i32
    %c0_i32_0 = arith.constant 0 : i32
    %c0_i32_1 = arith.constant 0 : i32
    return %c0_i32, %c0_i32_0 : i32, i32
  }
  func.func @transform_3(%arg0: i32) -> (i32, i32) {
    %c0_i32 = arith.constant 0 : i32
    %c0_i32_0 = arith.constant 0 : i32
    %c0_i32_1 = arith.constant 0 : i32
    return %c0_i32, %c0_i32_0 : i32, i32
  }
  func.func @transform_4(%arg0: i32) -> (i32, i32) {
    %c0_i32 = arith.constant 0 : i32
    %c0_i32_0 = arith.constant 0 : i32
    %c0_i32_1 = arith.constant 0 : i32
    return %c0_i32, %c0_i32_0 : i32, i32
  }
  func.func @transform_5(%arg0: i32) -> (i32, i32) {
    %c0_i32 = arith.constant 0 : i32
    %c0_i32_0 = arith.constant 0 : i32
    %c0_i32_1 = arith.constant 0 : i32
    return %c0_i32, %c0_i32_0 : i32, i32
  }
  func.func @transform_6(%arg0: i32) -> (i32, i32) {
    %c0_i32 = arith.constant 0 : i32
    %c0_i32_0 = arith.constant 0 : i32
    %c0_i32_1 = arith.constant 0 : i32
    return %c0_i32, %c0_i32_0 : i32, i32
  }
  func.func @transform_7(%arg0: i32) -> (i32, i32) {
    %c0_i32 = arith.constant 0 : i32
    %c0_i32_0 = arith.constant 0 : i32
    %c0_i32_1 = arith.constant 0 : i32
    return %c0_i32, %c0_i32_0 : i32, i32
  }
  func.func @transform_8(%arg0: i32) -> (i32, i32) {
    %c0_i32 = arith.constant 0 : i32
    %c0_i32_0 = arith.constant 0 : i32
    %c0_i32_1 = arith.constant 0 : i32
    return %c0_i32, %c0_i32_0 : i32, i32
  }
  func.func @transform_9(%arg0: i32) -> (i32, i32) {
    %c0_i32 = arith.constant 0 : i32
    %c0_i32_0 = arith.constant 0 : i32
    return %arg0, %c0_i32 : i32, i32
  }
}

</mosaic_0001>

<llo_original>
// kernel: dqn_forward.1
$region0: #{dqn_forward.1}
  #allocation0 [shape = 'u32[]', space=smem, size = 0x4, offset = 0x4, fixed_abs, tag = 'smem constant byte address 0x4 - core index']
  #allocation1 [shape = 'u32[72,128]{1,0:T(1,128)}', space=vmem, size = 0x9000, scoped, tag = 'internal scratch']
  %s0 = inlined_call_operand.vmem [shape: f32[256,16], index: 0, kind: input, shape index: {}]
  %s1 = inlined_call_operand.vmem [shape: bf16[16,128], index: 1, kind: input, shape index: {}]
  %s2 = inlined_call_operand.vmem [shape: f32[1,128], index: 2, kind: input, shape index: {}]
  %s3 = inlined_call_operand.vmem [shape: bf16[128,128], index: 3, kind: input, shape index: {}]
  %s4 = inlined_call_operand.vmem [shape: f32[1,128], index: 4, kind: input, shape index: {}]
  %s5 = inlined_call_operand.vmem [shape: bf16[128,128], index: 5, kind: input, shape index: {}]
  %s6 = inlined_call_operand.vmem [shape: f32[1,128], index: 6, kind: input, shape index: {}]
  %s7 = inlined_call_operand.vmem [shape: bf16[128,128], index: 7, kind: input, shape index: {}]
  %s8 = inlined_call_operand.vmem [shape: f32[1,128], index: 8, kind: input, shape index: {}]
  %s9 = inlined_call_operand.vmem [shape: f32[256,128], index: 9, kind: output, shape index: {}]
  %s10 = sld [smem:[#allocation0]]
  $region69: #{dqn_forward.1} parent=0
    _
  %s12 = ssub.s32 1, %s10
  %s13 = scalar_select 0, %s12, %s10
  loop: start=0, step=1, limit=4
  $region2: #{dqn_forward.1} parent=0 // loop_pre_header
    _
  $region3: #{dqn_forward.1} parent=0 // loop_header
    %s15 = sphi 0, %s19
    %p16 = scmp.ge.s32.totalorder %s15, 4
    %s25 = sphi 0, %s27
    %s28 = sphi 0, %s25
    %s29 = sphi 0, %s28
    %s45 = sphi 0, %s29
    %s49 = sphi 0, %s49
    %s51 = sphi 0, %s49
    %s52 = sphi 0, %s51
    %s66 = sphi 0, %s52
    %s70 = sphi 0, %s70
    %s72 = sphi 0, %s70
    %s73 = sphi 0, %s72
    %s87 = sphi 0, %s73
    %s91 = sphi 0, %s91
    %s93 = sphi 0, %s91
    %s94 = sphi 0, %s93
    %s108 = sphi 0, %s94
    %s112 = sphi 0, %s112
    %s114 = sphi 0, %s112
    %s115 = sphi 0, %s114
    %s129 = sphi 0, %s115
    %s133 = sphi 0, %s133
    %s135 = sphi 0, %s133
    %s136 = sphi 0, %s135
    %s150 = sphi 0, %s136
    %s154 = sphi 0, %s154
    %s156 = sphi 0, %s154
    %s157 = sphi 0, %s156
    %s171 = sphi 0, %s157
    %s175 = sphi 0, %s175
    %s177 = sphi 0, %s175
    %s178 = sphi 0, %s177
    %s192 = sphi 0, %s178
    %s196 = sphi 0, %s196
    %s198 = sphi 0, %s196
    %s199 = sphi 0, %s198
    %s213 = sphi 0, %s199
    %s219 = sphi 0, %s221
    %s222 = sphi 0, %s219
    %s223 = sphi 0, %s222
    %s239 = sphi 0, %s223
  $region4: #{dqn_forward.1} parent=0 // loop_header_branch
    %18 = sbr.rel (%p16) target = $region8
  $region5: #{dqn_forward.1} parent=0 // loop_body
    %s20 = ssub.s32 %s15, 1
    %s21 = ssub.s32 %s15, 2
    %s22 = sadd.s32 %s15, 1
    %s23 = ssub.s32 %s15, %s22
    %p24 = scmp.eq.s32.totalorder %s23, 0
    %s26 = sadd.s32 %s25, 1
    %s27 = scalar_select %p24, %s25, %s26
    %p30 = pneg %p24
    %p31 = scmp.eq.s32.totalorder %s15, 1
    %p32 = por %p30, %p31
    %p33 = scmp.ne.s32.totalorder %s25, %s28
    %p34 = scmp.eq.s32.totalorder %s15, 0
    %p35 = por %p33, %p34
    %p36 = scmp.ne.s32.totalorder %s25, %s28
    %p37 = scmp.eq.s32.totalorder %s20, 1
    %p38 = por %p36, %p37
    %p39 = scmp.ne.s32.totalorder %s28, %s29
    %p40 = scmp.eq.s32.totalorder %s20, 0
    %p41 = por %p39, %p40
    %p42 = scmp.ne.s32.totalorder %s28, %s29
    %p43 = scmp.eq.s32.totalorder %s21, 1
    %p44 = por %p42, %p43
    %p46 = scmp.ne.s32.totalorder %s29, %s45
    %p47 = scmp.eq.s32.totalorder %s21, 0
    %p48 = por %p46, %p47
    %s50 = sadd.s32 %s49, 1
    %p53 = scmp.eq.s32.totalorder %s15, 1
    %p54 = scmp.ne.s32.totalorder %s49, %s51
    %p55 = scmp.eq.s32.totalorder %s15, 0
    %p56 = por %p54, %p55
    %p57 = scmp.ne.s32.totalorder %s49, %s51
    %p58 = scmp.eq.s32.totalorder %s20, 1
    %p59 = por %p57, %p58
    %p60 = scmp.ne.s32.totalorder %s51, %s52
    %p61 = scmp.eq.s32.totalorder %s20, 0
    %p62 = por %p60, %p61
    %p63 = scmp.ne.s32.totalorder %s51, %s52
    %p64 = scmp.eq.s32.totalorder %s21, 1
    %p65 = por %p63, %p64
    %p67 = scmp.ne.s32.totalorder %s52, %s66
    %p68 = scmp.eq.s32.totalorder %s21, 0
    %p69 = por %p67, %p68
    %s71 = sadd.s32 %s70, 1
    %p74 = scmp.eq.s32.totalorder %s15, 1
    %p75 = scmp.ne.s32.totalorder %s70, %s72
    %p76 = scmp.eq.s32.totalorder %s15, 0
    %p77 = por %p75, %p76
    %p78 = scmp.ne.s32.totalorder %s70, %s72
    %p79 = scmp.eq.s32.totalorder %s20, 1
    %p80 = por %p78, %p79
    %p81 = scmp.ne.s32.totalorder %s72, %s73
    %p82 = scmp.eq.s32.totalorder %s20, 0
    %p83 = por %p81, %p82
    %p84 = scmp.ne.s32.totalorder %s72, %s73
    %p85 = scmp.eq.s32.totalorder %s21, 1
    %p86 = por %p84, %p85
    %p88 = scmp.ne.s32.totalorder %s73, %s87
    %p89 = scmp.eq.s32.totalorder %s21, 0
    %p90 = por %p88, %p89
    %s92 = sadd.s32 %s91, 1
    %p95 = scmp.eq.s32.totalorder %s15, 1
    %p96 = scmp.ne.s32.totalorder %s91, %s93
    %p97 = scmp.eq.s32.totalorder %s15, 0
    %p98 = por %p96, %p97
    %p99 = scmp.ne.s32.totalorder %s91, %s93
    %p100 = scmp.eq.s32.totalorder %s20, 1
    %p101 = por %p99, %p100
    %p102 = scmp.ne.s32.totalorder %s93, %s94
    %p103 = scmp.eq.s32.totalorder %s20, 0
    %p104 = por %p102, %p103
    %p105 = scmp.ne.s32.totalorder %s93, %s94
    %p106 = scmp.eq.s32.totalorder %s21, 1
    %p107 = por %p105, %p106
    %p109 = scmp.ne.s32.totalorder %s94, %s108
    %p110 = scmp.eq.s32.totalorder %s21, 0
    %p111 = por %p109, %p110
    %s113 = sadd.s32 %s112, 1
    %p116 = scmp.eq.s32.totalorder %s15, 1
    %p117 = scmp.ne.s32.totalorder %s112, %s114
    %p118 = scmp.eq.s32.totalorder %s15, 0
    %p119 = por %p117, %p118
    %p120 = scmp.ne.s32.totalorder %s112, %s114
    %p121 = scmp.eq.s32.totalorder %s20, 1
    %p122 = por %p120, %p121
    %p123 = scmp.ne.s32.totalorder %s114, %s115
    %p124 = scmp.eq.s32.totalorder %s20, 0
    %p125 = por %p123, %p124
    %p126 = scmp.ne.s32.totalorder %s114, %s115
    %p127 = scmp.eq.s32.totalorder %s21, 1
    %p128 = por %p126, %p127
    %p130 = scmp.ne.s32.totalorder %s115, %s129
    %p131 = scmp.eq.s32.totalorder %s21, 0
    %p132 = por %p130, %p131
    %s134 = sadd.s32 %s133, 1
    %p137 = scmp.eq.s32.totalorder %s15, 1
    %p138 = scmp.ne.s32.totalorder %s133, %s135
    %p139 = scmp.eq.s32.totalorder %s15, 0
    %p140 = por %p138, %p139
    %p141 = scmp.ne.s32.totalorder %s133, %s135
    %p142 = scmp.eq.s32.totalorder %s20, 1
    %p143 = por %p141, %p142
    %p144 = scmp.ne.s32.totalorder %s135, %s136
    %p145 = scmp.eq.s32.totalorder %s20, 0
    %p146 = por %p144, %p145
    %p147 = scmp.ne.s32.totalorder %s135, %s136
    %p148 = scmp.eq.s32.totalorder %s21, 1
    %p149 = por %p147, %p148
    %p151 = scmp.ne.s32.totalorder %s136, %s150
    %p152 = scmp.eq.s32.totalorder %s21, 0
    %p153 = por %p151, %p152
    %s155 = sadd.s32 %s154, 1
    %p158 = scmp.eq.s32.totalorder %s15, 1
    %p159 = scmp.ne.s32.totalorder %s154, %s156
    %p160 = scmp.eq.s32.totalorder %s15, 0
    %p161 = por %p159, %p160
    %p162 = scmp.ne.s32.totalorder %s154, %s156
    %p163 = scmp.eq.s32.totalorder %s20, 1
    %p164 = por %p162, %p163
    %p165 = scmp.ne.s32.totalorder %s156, %s157
    %p166 = scmp.eq.s32.totalorder %s20, 0
    %p167 = por %p165, %p166
    %p168 = scmp.ne.s32.totalorder %s156, %s157
    %p169 = scmp.eq.s32.totalorder %s21, 1
    %p170 = por %p168, %p169
    %p172 = scmp.ne.s32.totalorder %s157, %s171
    %p173 = scmp.eq.s32.totalorder %s21, 0
    %p174 = por %p172, %p173
    %s176 = sadd.s32 %s175, 1
    %p179 = scmp.eq.s32.totalorder %s15, 1
    %p180 = scmp.ne.s32.totalorder %s175, %s177
    %p181 = scmp.eq.s32.totalorder %s15, 0
    %p182 = por %p180, %p181
    %p183 = scmp.ne.s32.totalorder %s175, %s177
    %p184 = scmp.eq.s32.totalorder %s20, 1
    %p185 = por %p183, %p184
    %p186 = scmp.ne.s32.totalorder %s177, %s178
    %p187 = scmp.eq.s32.totalorder %s20, 0
    %p188 = por %p186, %p187
    %p189 = scmp.ne.s32.totalorder %s177, %s178
    %p190 = scmp.eq.s32.totalorder %s21, 1
    %p191 = por %p189, %p190
    %p193 = scmp.ne.s32.totalorder %s178, %s192
    %p194 = scmp.eq.s32.totalorder %s21, 0
    %p195 = por %p193, %p194
    %s197 = sadd.s32 %s196, 1
    %p200 = scmp.eq.s32.totalorder %s15, 1
    %p201 = scmp.ne.s32.totalorder %s196, %s198
    %p202 = scmp.eq.s32.totalorder %s15, 0
    %p203 = por %p201, %p202
    %p204 = scmp.ne.s32.totalorder %s196, %s198
    %p205 = scmp.eq.s32.totalorder %s20, 1
    %p206 = por %p204, %p205
    %p207 = scmp.ne.s32.totalorder %s198, %s199
    %p208 = scmp.eq.s32.totalorder %s20, 0
    %p209 = por %p207, %p208
    %p210 = scmp.ne.s32.totalorder %s198, %s199
    %p211 = scmp.eq.s32.totalorder %s21, 1
    %p212 = por %p210, %p211
    %p214 = scmp.ne.s32.totalorder %s199, %s213
    %p215 = scmp.eq.s32.totalorder %s21, 0
    %p216 = por %p214, %p215
    %s217 = ssub.s32 %s15, %s22
    %p218 = scmp.eq.s32.totalorder %s217, 0
    %s220 = sadd.s32 %s219, 1
    %s221 = scalar_select %p218, %s219, %s220
    %p224 = pneg %p218
    %p225 = scmp.eq.s32.totalorder %s15, 1
    %p226 = por %p224, %p225
    %p227 = scmp.ne.s32.totalorder %s219, %s222
    %p228 = scmp.eq.s32.totalorder %s15, 0
    %p229 = por %p227, %p228
    %p230 = scmp.ne.s32.totalorder %s219, %s222
    %p231 = scmp.eq.s32.totalorder %s20, 1
    %p232 = por %p230, %p231
    %p233 = scmp.ne.s32.totalorder %s222, %s223
    %p234 = scmp.eq.s32.totalorder %s20, 0
    %p235 = por %p233, %p234
    %p236 = scmp.ne.s32.totalorder %s222, %s223
    %p237 = scmp.eq.s32.totalorder %s21, 1
    %p238 = por %p236, %p237
    %p240 = scmp.ne.s32.totalorder %s223, %s239
    %p241 = scmp.eq.s32.totalorder %s21, 0
    %p242 = por %p240, %p241
    %p243 = scmp.le.s32.totalorder 1, %s15
    %p244 = scmp.lt.s32.totalorder %s15, 3
    %p245 = pnand %p243, %p244
    %p246 = pneg %p245
    // Predicated region
    $region9: #{dqn_forward.1} parent=5 // pred_check
      _
    $region10: #{dqn_forward.1} parent=5 // pred_check_branch
      %248 = sbr.rel (%p245) target = $region12
    $region11: #{dqn_forward.1} parent=5 // pred_region
      %s249 = ssub.s32 %s15, 1
      // Predicated region
      $region13: #{dqn_forward.1} parent=11 // pred_check
        %p250 = pneg %p62
      $region14: #{dqn_forward.1} parent=11 // pred_check_branch
        %252 = sbr.rel (%p250) target = $region16
      $region15: #{dqn_forward.1} parent=11 // pred_region
        _
      $region16: #{dqn_forward.1} parent=11 // pred_fallthru
        _
      // Predicated region
      $region17: #{dqn_forward.1} parent=11 // pred_check
        %p253 = pneg %p83
      $region18: #{dqn_forward.1} parent=11 // pred_check_branch
        %255 = sbr.rel (%p253) target = $region20
      $region19: #{dqn_forward.1} parent=11 // pred_region
        _
      $region20: #{dqn_forward.1} parent=11 // pred_fallthru
        _
      // Predicated region
      $region21: #{dqn_forward.1} parent=11 // pred_check
        %p256 = pneg %p104
      $region22: #{dqn_forward.1} parent=11 // pred_check_branch
        %258 = sbr.rel (%p256) target = $region24
      $region23: #{dqn_forward.1} parent=11 // pred_region
        _
      $region24: #{dqn_forward.1} parent=11 // pred_fallthru
        _
      // Predicated region
      $region25: #{dqn_forward.1} parent=11 // pred_check
        %p259 = pneg %p125
      $region26: #{dqn_forward.1} parent=11 // pred_check_branch
        %261 = sbr.rel (%p259) target = $region28
      $region27: #{dqn_forward.1} parent=11 // pred_region
        _
      $region28: #{dqn_forward.1} parent=11 // pred_fallthru
        _
      // Predicated region
      $region29: #{dqn_forward.1} parent=11 // pred_check
        %p262 = pneg %p146
      $region30: #{dqn_forward.1} parent=11 // pred_check_branch
        %264 = sbr.rel (%p262) target = $region32
      $region31: #{dqn_forward.1} parent=11 // pred_region
        _
      $region32: #{dqn_forward.1} parent=11 // pred_fallthru
        _
      // Predicated region
      $region33: #{dqn_forward.1} parent=11 // pred_check
        %p265 = pneg %p167
      $region34: #{dqn_forward.1} parent=11 // pred_check_branch
        %267 = sbr.rel (%p265) target = $region36
      $region35: #{dqn_forward.1} parent=11 // pred_region
        _
      $region36: #{dqn_forward.1} parent=11 // pred_fallthru
        _
      // Predicated region
      $region37: #{dqn_forward.1} parent=11 // pred_check
        %p268 = pneg %p188
      $region38: #{dqn_forward.1} parent=11 // pred_check_branch
        %270 = sbr.rel (%p268) target = $region40
      $region39: #{dqn_forward.1} parent=11 // pred_region
        _
      $region40: #{dqn_forward.1} parent=11 // pred_fallthru
        _
      // Predicated region
      $region41: #{dqn_forward.1} parent=11 // pred_check
        %p271 = pneg %p209
      $region42: #{dqn_forward.1} parent=11 // pred_check_branch
        %273 = sbr.rel (%p271) target = $region44
      $region43: #{dqn_forward.1} parent=11 // pred_region
        _
      $region44: #{dqn_forward.1} parent=11 // pred_fallthru
        _
    $region12: #{dqn_forward.1} parent=5 // pred_fallthru
      _
    %p274 = scmp.lt.s32.totalorder %s15, 2
    // Predicated region
    $region45: #{dqn_forward.1} parent=5 // pred_check
      %p275 = pneg %p274
    $region46: #{dqn_forward.1} parent=5 // pred_check_branch
      %277 = sbr.rel (%p275) target = $region48
    $region47: #{dqn_forward.1} parent=5 // pred_region
      // Predicated region
      $region49: #{dqn_forward.1} parent=47 // pred_check
        %p278 = pneg %p35
      $region50: #{dqn_forward.1} parent=47 // pred_check_branch
        %280 = sbr.rel (%p278) target = $region52
      $region51: #{dqn_forward.1} parent=47 // pred_region
        %s281 = smul.u32 16, %s15
        %p282 = scmp.lt.s32.totalorder %s281, 31
        %s283 = scalar_select %p282, %s281, 31
        %s284 = smul.addr %s283, 8
        %s285 = scalar_lea.vmem %s0, %s284
        %s286 = smul.u32 16, %s15
      $region52: #{dqn_forward.1} parent=47 // pred_fallthru
        _
    $region48: #{dqn_forward.1} parent=5 // pred_fallthru
      _
    %p287 = scmp.le.s32.totalorder 1, %s15
    %p288 = scmp.lt.s32.totalorder %s15, 3
    %p289 = pnand %p287, %p288
    %p290 = pneg %p289
    // Predicated region
    $region53: #{dqn_forward.1} parent=5 // pred_check
      _
    $region54: #{dqn_forward.1} parent=5 // pred_check_branch
      %292 = sbr.rel (%p289) target = $region56
    $region55: #{dqn_forward.1} parent=5 // pred_region
      %s293 = ssub.s32 %s15, 1
      %s294 = smul.u32 16, %s20
      %p295 = scmp.lt.s32.totalorder %s294, 31
      %s296 = scalar_select %p295, %s294, 31
      %s297 = smul.addr %s296, 8
      %s298 = scalar_lea.vmem %s0, %s297
      %p299 = pneg %p41
      %p300 = pneg %p38
      %p301 = pneg %p62
      %p302 = pneg %p59
      %p303 = pneg %p83
      %p304 = pneg %p80
      %p305 = pneg %p104
      %p306 = pneg %p101
      %p307 = pneg %p125
      %p308 = pneg %p122
      %p309 = pneg %p146
      %p310 = pneg %p143
      %p311 = pneg %p167
      %p312 = pneg %p164
      %p313 = pneg %p188
      %p314 = pneg %p185
      %p315 = pneg %p209
      %p316 = pneg %p206
      %p317 = pneg %p235
      %p318 = pneg %p232
      %s319 = smul.u32 16, %s20
      %p320 = scmp.lt.s32.totalorder %s319, 31
      %s321 = scalar_select %p320, %s319, 31
      %s322 = smul.addr %s321, 8
      %s323 = scalar_lea.vmem %s9, %s322
      %s324 = smul.u32 16, %s20
      %p325 = scmp.lt.s32.totalorder %s324, 31
      %s326 = scalar_select %p325, %s324, 31
      %s327 = smul.addr %s326, 8
      %s328 = scalar_lea.vmem %s0, %s327
      %s329 = smul.u32 16, %s20
      %s330 = smul.u32 16, %s20
      %p331 = scmp.lt.s32.totalorder %s330, 31
      %s332 = scalar_select %p331, %s330, 31
      %s333 = smul.addr %s332, 8
      %s334 = scalar_lea.vmem %s9, %s333
      %s335 = smul.u32 16, %s20
      %v337 = vld [vmem:[%s328] sm:$0xff]
      %v338 = vld [vmem:[%s328 + $0x8] sm:$0xff]
      %v339 = vld [vmem:[%s328 + $0x10] sm:$0xff]
      %v340 = vld [vmem:[%s328 + $0x18] sm:$0xff]
      %v341 = vld [vmem:[%s328 + $0x20] sm:$0xff]
      %v342 = vld [vmem:[%s328 + $0x28] sm:$0xff]
      %v343 = vld [vmem:[%s328 + $0x30] sm:$0xff]
      %v344 = vld [vmem:[%s328 + $0x38] sm:$0xff]
      %v345 = vld [vmem:[%s328 + $0x40] sm:$0xff]
      %v346 = vld [vmem:[%s328 + $0x48] sm:$0xff]
      %v347 = vld [vmem:[%s328 + $0x50] sm:$0xff]
      %v348 = vld [vmem:[%s328 + $0x58] sm:$0xff]
      %v349 = vld [vmem:[%s328 + $0x60] sm:$0xff]
      %v350 = vld [vmem:[%s328 + $0x68] sm:$0xff]
      %v351 = vld [vmem:[%s328 + $0x70] sm:$0xff]
      %v352 = vld [vmem:[%s328 + $0x78] sm:$0xff]
      %v353 = vpack.c.bf16 %v338, %v337
      %v354 = vpack.c.bf16 %v340, %v339
      %v355 = vpack.c.bf16 %v342, %v341
      %v356 = vpack.c.bf16 %v344, %v343
      %v357 = vpack.c.bf16 %v346, %v345
      %v358 = vpack.c.bf16 %v348, %v347
      %v359 = vpack.c.bf16 %v350, %v349
      %v360 = vpack.c.bf16 %v352, %v351
      %v361 = vld [vmem:[%s1] sm:$0xf]
      %v362 = vld [vmem:[%s1 + $0x4] sm:$0xf]
      %v363 = vld [vmem:[%s2] sm:$0x1]
      %v365 = vperm.slane %v363, 0
      %v369 = vunpack.c.l.b16 %v361
      %v370 = vunpack.c.l.b16 %v362
      %v371 = vpack.c.b16 %v370, %v369
      %vm373 = vcmask 130048
      %v375 = vsel %vm373, %v353, 0
      %v378 = vsel %vm373, %v354, 0
      %v381 = vsel %vm373, %v355, 0
      %v384 = vsel %vm373, %v356, 0
      %v387 = vsel %vm373, %v357, 0
      %v390 = vsel %vm373, %v358, 0
      %v393 = vsel %vm373, %v359, 0
      %v396 = vsel %vm373, %v360, 0
      %398 = vmatpush.bf16.msra.mxu0 0
      %399 = vmatpush.bf16.msra.mxu0 0
      %400 = vmatpush.bf16.msra.mxu0 0
      %401 = vmatpush.bf16.msra.mxu0 0
      %402 = vmatpush.bf16.msra.mxu0 0
      %403 = vmatpush.bf16.msra.mxu0 0
      %404 = vmatpush.bf16.msra.mxu0 0
      %405 = vmatpush.bf16.msra.mxu0 %v371
      %406 = vmatmul.bf16.gmra.mxu0 %v375
      %v407 = vpop.f32.mrf.mxu0
      %v408 = vadd.f32 %v365, %v407
      %v409 = vpop.f32.mrf.mxu0
      %v410 = vadd.f32 %v365, %v409
      %411 = vmatmul.bf16.gmra.mxu0 %v378
      %v412 = vpop.f32.mrf.mxu0
      %v413 = vadd.f32 %v365, %v412
      %v414 = vpop.f32.mrf.mxu0
      %v415 = vadd.f32 %v365, %v414
      %416 = vmatmul.bf16.gmra.mxu0 %v381
      %v417 = vpop.f32.mrf.mxu0
      %v418 = vadd.f32 %v365, %v417
      %v419 = vpop.f32.mrf.mxu0
      %v420 = vadd.f32 %v365, %v419
      %421 = vmatmul.bf16.gmra.mxu0 %v384
      %v422 = vpop.f32.mrf.mxu0
      %v423 = vadd.f32 %v365, %v422
      %v424 = vpop.f32.mrf.mxu0
      %v425 = vadd.f32 %v365, %v424
      %426 = vmatmul.bf16.gmra.mxu0 %v387
      %v427 = vpop.f32.mrf.mxu0
      %v428 = vadd.f32 %v365, %v427
      %v429 = vpop.f32.mrf.mxu0
      %v430 = vadd.f32 %v365, %v429
      %431 = vmatmul.bf16.gmra.mxu0 %v390
      %v432 = vpop.f32.mrf.mxu0
      %v433 = vadd.f32 %v365, %v432
      %v434 = vpop.f32.mrf.mxu0
      %v435 = vadd.f32 %v365, %v434
      %436 = vmatmul.bf16.gmra.mxu0 %v393
      %v437 = vpop.f32.mrf.mxu0
      %v438 = vadd.f32 %v365, %v437
      %v439 = vpop.f32.mrf.mxu0
      %v440 = vadd.f32 %v365, %v439
      %441 = vmatmul.bf16.gmra.mxu0 %v396
      %v442 = vpop.f32.mrf.mxu0
      %v443 = vadd.f32 %v365, %v442
      %v444 = vpop.f32.mrf.mxu0
      %v445 = vadd.f32 %v365, %v444
      %446 = vdwg.mxu0
      %v447 = vmax.f32 %v408, 0.0
      %v448 = vmax.f32 %v410, 0.0
      %v449 = vmax.f32 %v413, 0.0
      %v450 = vmax.f32 %v415, 0.0
      %v451 = vmax.f32 %v418, 0.0
      %v452 = vmax.f32 %v420, 0.0
      %v453 = vmax.f32 %v423, 0.0
      %v454 = vmax.f32 %v425, 0.0
      %v455 = vmax.f32 %v428, 0.0
      %v456 = vmax.f32 %v430, 0.0
      %v457 = vmax.f32 %v433, 0.0
      %v458 = vmax.f32 %v435, 0.0
      %v459 = vmax.f32 %v438, 0.0
      %v460 = vmax.f32 %v440, 0.0
      %v461 = vmax.f32 %v443, 0.0
      %v462 = vmax.f32 %v445, 0.0
      %v463 = vpack.c.bf16 %v448, %v447
      %v464 = vpack.c.bf16 %v450, %v449
      %v465 = vpack.c.bf16 %v452, %v451
      %v466 = vpack.c.bf16 %v454, %v453
      %v467 = vpack.c.bf16 %v456, %v455
      %v468 = vpack.c.bf16 %v458, %v457
      %v469 = vpack.c.bf16 %v460, %v459
      %v470 = vpack.c.bf16 %v462, %v461
      %v471 = vld [vmem:[%s3] sm:$0xf]
      %v472 = vld [vmem:[%s3 + $0x4] sm:$0xf]
      %v473 = vld [vmem:[%s3 + $0x8] sm:$0xf]
      %v474 = vld [vmem:[%s3 + $0xc] sm:$0xf]
      %v475 = vld [vmem:[%s3 + $0x10] sm:$0xf]
      %v476 = vld [vmem:[%s3 + $0x14] sm:$0xf]
      %v477 = vld [vmem:[%s3 + $0x18] sm:$0xf]
      %v478 = vld [vmem:[%s3 + $0x1c] sm:$0xf]
      %v479 = vld [vmem:[%s3 + $0x20] sm:$0xf]
      %v480 = vld [vmem:[%s3 + $0x24] sm:$0xf]
      %v481 = vld [vmem:[%s3 + $0x28] sm:$0xf]
      %v482 = vld [vmem:[%s3 + $0x2c] sm:$0xf]
      %v483 = vld [vmem:[%s3 + $0x30] sm:$0xf]
      %v484 = vld [vmem:[%s3 + $0x34] sm:$0xf]
      %v485 = vld [vmem:[%s3 + $0x38] sm:$0xf]
      %v486 = vld [vmem:[%s3 + $0x3c] sm:$0xf]
      %v487 = vld [vmem:[%s4] sm:$0x1]
      %v489 = vperm.slane %v487, 0
      %v507 = vunpack.c.l.b16 %v471
      %v508 = vunpack.c.l.b16 %v472
      %v509 = vunpack.c.l.b16 %v473
      %v510 = vunpack.c.l.b16 %v474
      %v511 = vunpack.c.l.b16 %v475
      %v512 = vunpack.c.l.b16 %v476
      %v513 = vunpack.c.l.b16 %v477
      %v514 = vunpack.c.l.b16 %v478
      %v515 = vunpack.c.l.b16 %v479
      %v516 = vunpack.c.l.b16 %v480
      %v517 = vunpack.c.l.b16 %v481
      %v518 = vunpack.c.l.b16 %v482
      %v519 = vunpack.c.l.b16 %v483
      %v520 = vunpack.c.l.b16 %v484
      %v521 = vunpack.c.l.b16 %v485
      %v522 = vunpack.c.l.b16 %v486
      %v523 = vpack.c.b16 %v508, %v507
      %v524 = vpack.c.b16 %v510, %v509
      %v525 = vpack.c.b16 %v512, %v511
      %v526 = vpack.c.b16 %v514, %v513
      %v527 = vpack.c.b16 %v516, %v515
      %v528 = vpack.c.b16 %v518, %v517
      %v529 = vpack.c.b16 %v520, %v519
      %v530 = vpack.c.b16 %v522, %v521
      %539 = vmatpush.bf16.msra.mxu0 %v530
      %540 = vmatpush.bf16.msra.mxu0 %v529
      %541 = vmatpush.bf16.msra.mxu0 %v528
      %542 = vmatpush.bf16.msra.mxu0 %v527
      %543 = vmatpush.bf16.msra.mxu0 %v526
      %544 = vmatpush.bf16.msra.mxu0 %v525
      %545 = vmatpush.bf16.msra.mxu0 %v524
      %546 = vmatpush.bf16.msra.mxu0 %v523
      %547 = vmatmul.bf16.gmra.mxu0 %v463
      %v548 = vpop.f32.mrf.mxu0
      %v549 = vadd.f32 %v489, %v548
      %v550 = vpop.f32.mrf.mxu0
      %v551 = vadd.f32 %v489, %v550
      %552 = vmatmul.bf16.gmra.mxu0 %v464
      %v553 = vpop.f32.mrf.mxu0
      %v554 = vadd.f32 %v489, %v553
      %v555 = vpop.f32.mrf.mxu0
      %v556 = vadd.f32 %v489, %v555
      %557 = vmatmul.bf16.gmra.mxu0 %v465
      %v558 = vpop.f32.mrf.mxu0
      %v559 = vadd.f32 %v489, %v558
      %v560 = vpop.f32.mrf.mxu0
      %v561 = vadd.f32 %v489, %v560
      %562 = vmatmul.bf16.gmra.mxu0 %v466
      %v563 = vpop.f32.mrf.mxu0
      %v564 = vadd.f32 %v489, %v563
      %v565 = vpop.f32.mrf.mxu0
      %v566 = vadd.f32 %v489, %v565
      %567 = vmatmul.bf16.gmra.mxu0 %v467
      %v568 = vpop.f32.mrf.mxu0
      %v569 = vadd.f32 %v489, %v568
      %v570 = vpop.f32.mrf.mxu0
      %v571 = vadd.f32 %v489, %v570
      %572 = vmatmul.bf16.gmra.mxu0 %v468
      %v573 = vpop.f32.mrf.mxu0
      %v574 = vadd.f32 %v489, %v573
      %v575 = vpop.f32.mrf.mxu0
      %v576 = vadd.f32 %v489, %v575
      %577 = vmatmul.bf16.gmra.mxu0 %v469
      %v578 = vpop.f32.mrf.mxu0
      %v579 = vadd.f32 %v489, %v578
      %v580 = vpop.f32.mrf.mxu0
      %v581 = vadd.f32 %v489, %v580
      %582 = vmatmul.bf16.gmra.mxu0 %v470
      %v583 = vpop.f32.mrf.mxu0
      %v584 = vadd.f32 %v489, %v583
      %v585 = vpop.f32.mrf.mxu0
      %v586 = vadd.f32 %v489, %v585
      %587 = vdwg.mxu0
      %v588 = vmax.f32 %v549, 0.0
      %v589 = vmax.f32 %v551, 0.0
      %v590 = vmax.f32 %v554, 0.0
      %v591 = vmax.f32 %v556, 0.0
      %v592 = vmax.f32 %v559, 0.0
      %v593 = vmax.f32 %v561, 0.0
      %v594 = vmax.f32 %v564, 0.0
      %v595 = vmax.f32 %v566, 0.0
      %v596 = vmax.f32 %v569, 0.0
      %v597 = vmax.f32 %v571, 0.0
      %v598 = vmax.f32 %v574, 0.0
      %v599 = vmax.f32 %v576, 0.0
      %v600 = vmax.f32 %v579, 0.0
      %v601 = vmax.f32 %v581, 0.0
      %v602 = vmax.f32 %v584, 0.0
      %v603 = vmax.f32 %v586, 0.0
      %v604 = vpack.c.bf16 %v589, %v588
      %v605 = vpack.c.bf16 %v591, %v590
      %v606 = vpack.c.bf16 %v593, %v592
      %v607 = vpack.c.bf16 %v595, %v594
      %v608 = vpack.c.bf16 %v597, %v596
      %v609 = vpack.c.bf16 %v599, %v598
      %v610 = vpack.c.bf16 %v601, %v600
      %v611 = vpack.c.bf16 %v603, %v602
      %v612 = vld [vmem:[%s5] sm:$0xf]
      %v613 = vld [vmem:[%s5 + $0x4] sm:$0xf]
      %v614 = vld [vmem:[%s5 + $0x8] sm:$0xf]
      %v615 = vld [vmem:[%s5 + $0xc] sm:$0xf]
      %v616 = vld [vmem:[%s5 + $0x10] sm:$0xf]
      %v617 = vld [vmem:[%s5 + $0x14] sm:$0xf]
      %v618 = vld [vmem:[%s5 + $0x18] sm:$0xf]
      %v619 = vld [vmem:[%s5 + $0x1c] sm:$0xf]
      %v620 = vld [vmem:[%s5 + $0x20] sm:$0xf]
      %v621 = vld [vmem:[%s5 + $0x24] sm:$0xf]
      %v622 = vld [vmem:[%s5 + $0x28] sm:$0xf]
      %v623 = vld [vmem:[%s5 + $0x2c] sm:$0xf]
      %v624 = vld [vmem:[%s5 + $0x30] sm:$0xf]
      %v625 = vld [vmem:[%s5 + $0x34] sm:$0xf]
      %v626 = vld [vmem:[%s5 + $0x38] sm:$0xf]
      %v627 = vld [vmem:[%s5 + $0x3c] sm:$0xf]
      %v628 = vld [vmem:[%s6] sm:$0x1]
      %v630 = vperm.slane %v628, 0
      %v648 = vunpack.c.l.b16 %v612
      %v649 = vunpack.c.l.b16 %v613
      %v650 = vunpack.c.l.b16 %v614
      %v651 = vunpack.c.l.b16 %v615
      %v652 = vunpack.c.l.b16 %v616
      %v653 = vunpack.c.l.b16 %v617
      %v654 = vunpack.c.l.b16 %v618
      %v655 = vunpack.c.l.b16 %v619
      %v656 = vunpack.c.l.b16 %v620
      %v657 = vunpack.c.l.b16 %v621
      %v658 = vunpack.c.l.b16 %v622
      %v659 = vunpack.c.l.b16 %v623
      %v660 = vunpack.c.l.b16 %v624
      %v661 = vunpack.c.l.b16 %v625
      %v662 = vunpack.c.l.b16 %v626
      %v663 = vunpack.c.l.b16 %v627
      %v664 = vpack.c.b16 %v649, %v648
      %v665 = vpack.c.b16 %v651, %v650
      %v666 = vpack.c.b16 %v653, %v652
      %v667 = vpack.c.b16 %v655, %v654
      %v668 = vpack.c.b16 %v657, %v656
      %v669 = vpack.c.b16 %v659, %v658
      %v670 = vpack.c.b16 %v661, %v660
      %v671 = vpack.c.b16 %v663, %v662
      %680 = vmatpush.bf16.msra.mxu0 %v671
      %681 = vmatpush.bf16.msra.mxu0 %v670
      %682 = vmatpush.bf16.msra.mxu0 %v669
      %683 = vmatpush.bf16.msra.mxu0 %v668
      %684 = vmatpush.bf16.msra.mxu0 %v667
      %685 = vmatpush.bf16.msra.mxu0 %v666
      %686 = vmatpush.bf16.msra.mxu0 %v665
      %687 = vmatpush.bf16.msra.mxu0 %v664
      %688 = vmatmul.bf16.gmra.mxu0 %v604
      %v689 = vpop.f32.mrf.mxu0
      %v690 = vadd.f32 %v630, %v689
      %v691 = vpop.f32.mrf.mxu0
      %v692 = vadd.f32 %v630, %v691
      %693 = vmatmul.bf16.gmra.mxu0 %v605
      %v694 = vpop.f32.mrf.mxu0
      %v695 = vadd.f32 %v630, %v694
      %v696 = vpop.f32.mrf.mxu0
      %v697 = vadd.f32 %v630, %v696
      %698 = vmatmul.bf16.gmra.mxu0 %v606
      %v699 = vpop.f32.mrf.mxu0
      %v700 = vadd.f32 %v630, %v699
      %v701 = vpop.f32.mrf.mxu0
      %v702 = vadd.f32 %v630, %v701
      %703 = vmatmul.bf16.gmra.mxu0 %v607
      %v704 = vpop.f32.mrf.mxu0
      %v705 = vadd.f32 %v630, %v704
      %v706 = vpop.f32.mrf.mxu0
      %v707 = vadd.f32 %v630, %v706
      %708 = vmatmul.bf16.gmra.mxu0 %v608
      %v709 = vpop.f32.mrf.mxu0
      %v710 = vadd.f32 %v630, %v709
      %v711 = vpop.f32.mrf.mxu0
      %v712 = vadd.f32 %v630, %v711
      %713 = vmatmul.bf16.gmra.mxu0 %v609
      %v714 = vpop.f32.mrf.mxu0
      %v715 = vadd.f32 %v630, %v714
      %v716 = vpop.f32.mrf.mxu0
      %v717 = vadd.f32 %v630, %v716
      %718 = vmatmul.bf16.gmra.mxu0 %v610
      %v719 = vpop.f32.mrf.mxu0
      %v720 = vadd.f32 %v630, %v719
      %v721 = vpop.f32.mrf.mxu0
      %v722 = vadd.f32 %v630, %v721
      %723 = vmatmul.bf16.gmra.mxu0 %v611
      %v724 = vpop.f32.mrf.mxu0
      %v725 = vadd.f32 %v630, %v724
      %v726 = vpop.f32.mrf.mxu0
      %v727 = vadd.f32 %v630, %v726
      %728 = vdwg.mxu0
      %v729 = vmax.f32 %v690, 0.0
      %v730 = vmax.f32 %v692, 0.0
      %v731 = vmax.f32 %v695, 0.0
      %v732 = vmax.f32 %v697, 0.0
      %v733 = vmax.f32 %v700, 0.0
      %v734 = vmax.f32 %v702, 0.0
      %v735 = vmax.f32 %v705, 0.0
      %v736 = vmax.f32 %v707, 0.0
      %v737 = vmax.f32 %v710, 0.0
      %v738 = vmax.f32 %v712, 0.0
      %v739 = vmax.f32 %v715, 0.0
      %v740 = vmax.f32 %v717, 0.0
      %v741 = vmax.f32 %v720, 0.0
      %v742 = vmax.f32 %v722, 0.0
      %v743 = vmax.f32 %v725, 0.0
      %v744 = vmax.f32 %v727, 0.0
      %v745 = vpack.c.bf16 %v730, %v729
      %v746 = vpack.c.bf16 %v732, %v731
      %v747 = vpack.c.bf16 %v734, %v733
      %v748 = vpack.c.bf16 %v736, %v735
      %v749 = vpack.c.bf16 %v738, %v737
      %v750 = vpack.c.bf16 %v740, %v739
      %v751 = vpack.c.bf16 %v742, %v741
      %v752 = vpack.c.bf16 %v744, %v743
      %v753 = vld [vmem:[%s7] sm:$0xf]
      %v754 = vld [vmem:[%s7 + $0x4] sm:$0xf]
      %v755 = vld [vmem:[%s7 + $0x8] sm:$0xf]
      %v756 = vld [vmem:[%s7 + $0xc] sm:$0xf]
      %v757 = vld [vmem:[%s7 + $0x10] sm:$0xf]
      %v758 = vld [vmem:[%s7 + $0x14] sm:$0xf]
      %v759 = vld [vmem:[%s7 + $0x18] sm:$0xf]
      %v760 = vld [vmem:[%s7 + $0x1c] sm:$0xf]
      %v761 = vld [vmem:[%s7 + $0x20] sm:$0xf]
      %v762 = vld [vmem:[%s7 + $0x24] sm:$0xf]
      %v763 = vld [vmem:[%s7 + $0x28] sm:$0xf]
      %v764 = vld [vmem:[%s7 + $0x2c] sm:$0xf]
      %v765 = vld [vmem:[%s7 + $0x30] sm:$0xf]
      %v766 = vld [vmem:[%s7 + $0x34] sm:$0xf]
      %v767 = vld [vmem:[%s7 + $0x38] sm:$0xf]
      %v768 = vld [vmem:[%s7 + $0x3c] sm:$0xf]
      %v769 = vld [vmem:[%s8] sm:$0x1]
      %v771 = vperm.slane %v769, 0
      %v789 = vunpack.c.l.b16 %v753
      %v790 = vunpack.c.l.b16 %v754
      %v791 = vunpack.c.l.b16 %v755
      %v792 = vunpack.c.l.b16 %v756
      %v793 = vunpack.c.l.b16 %v757
      %v794 = vunpack.c.l.b16 %v758
      %v795 = vunpack.c.l.b16 %v759
      %v796 = vunpack.c.l.b16 %v760
      %v797 = vunpack.c.l.b16 %v761
      %v798 = vunpack.c.l.b16 %v762
      %v799 = vunpack.c.l.b16 %v763
      %v800 = vunpack.c.l.b16 %v764
      %v801 = vunpack.c.l.b16 %v765
      %v802 = vunpack.c.l.b16 %v766
      %v803 = vunpack.c.l.b16 %v767
      %v804 = vunpack.c.l.b16 %v768
      %v805 = vpack.c.b16 %v790, %v789
      %v806 = vpack.c.b16 %v792, %v791
      %v807 = vpack.c.b16 %v794, %v793
      %v808 = vpack.c.b16 %v796, %v795
      %v809 = vpack.c.b16 %v798, %v797
      %v810 = vpack.c.b16 %v800, %v799
      %v811 = vpack.c.b16 %v802, %v801
      %v812 = vpack.c.b16 %v804, %v803
      %821 = vmatpush.bf16.msra.mxu0 %v812
      %822 = vmatpush.bf16.msra.mxu0 %v811
      %823 = vmatpush.bf16.msra.mxu0 %v810
      %824 = vmatpush.bf16.msra.mxu0 %v809
      %825 = vmatpush.bf16.msra.mxu0 %v808
      %826 = vmatpush.bf16.msra.mxu0 %v807
      %827 = vmatpush.bf16.msra.mxu0 %v806
      %828 = vmatpush.bf16.msra.mxu0 %v805
      %829 = vmatmul.bf16.gmra.mxu0 %v745
      %v830 = vpop.f32.mrf.mxu0
      %v831 = vadd.f32 %v771, %v830
      %v832 = vpop.f32.mrf.mxu0
      %v833 = vadd.f32 %v771, %v832
      %834 = vmatmul.bf16.gmra.mxu0 %v746
      %v835 = vpop.f32.mrf.mxu0
      %v836 = vadd.f32 %v771, %v835
      %v837 = vpop.f32.mrf.mxu0
      %v838 = vadd.f32 %v771, %v837
      %839 = vmatmul.bf16.gmra.mxu0 %v747
      %v840 = vpop.f32.mrf.mxu0
      %v841 = vadd.f32 %v771, %v840
      %v842 = vpop.f32.mrf.mxu0
      %v843 = vadd.f32 %v771, %v842
      %844 = vmatmul.bf16.gmra.mxu0 %v748
      %v845 = vpop.f32.mrf.mxu0
      %v846 = vadd.f32 %v771, %v845
      %v847 = vpop.f32.mrf.mxu0
      %v848 = vadd.f32 %v771, %v847
      %849 = vmatmul.bf16.gmra.mxu0 %v749
      %v850 = vpop.f32.mrf.mxu0
      %v851 = vadd.f32 %v771, %v850
      %v852 = vpop.f32.mrf.mxu0
      %v853 = vadd.f32 %v771, %v852
      %854 = vmatmul.bf16.gmra.mxu0 %v750
      %v855 = vpop.f32.mrf.mxu0
      %v856 = vadd.f32 %v771, %v855
      %v857 = vpop.f32.mrf.mxu0
      %v858 = vadd.f32 %v771, %v857
      %859 = vmatmul.bf16.gmra.mxu0 %v751
      %v860 = vpop.f32.mrf.mxu0
      %v861 = vadd.f32 %v771, %v860
      %v862 = vpop.f32.mrf.mxu0
      %v863 = vadd.f32 %v771, %v862
      %864 = vmatmul.bf16.gmra.mxu0 %v752
      %v865 = vpop.f32.mrf.mxu0
      %v866 = vadd.f32 %v771, %v865
      %v867 = vpop.f32.mrf.mxu0
      %v868 = vadd.f32 %v771, %v867
      %869 = vdwg.mxu0
      %870 = vst [vmem:[%s334] sm:$0xff] %v831
      %871 = vst [vmem:[%s334 + $0x8] sm:$0xff] %v833
      %872 = vst [vmem:[%s334 + $0x10] sm:$0xff] %v836
      %873 = vst [vmem:[%s334 + $0x18] sm:$0xff] %v838
      %874 = vst [vmem:[%s334 + $0x20] sm:$0xff] %v841
      %875 = vst [vmem:[%s334 + $0x28] sm:$0xff] %v843
      %876 = vst [vmem:[%s334 + $0x30] sm:$0xff] %v846
      %877 = vst [vmem:[%s334 + $0x38] sm:$0xff] %v848
      %878 = vst [vmem:[%s334 + $0x40] sm:$0xff] %v851
      %879 = vst [vmem:[%s334 + $0x48] sm:$0xff] %v853
      %880 = vst [vmem:[%s334 + $0x50] sm:$0xff] %v856
      %881 = vst [vmem:[%s334 + $0x58] sm:$0xff] %v858
      %882 = vst [vmem:[%s334 + $0x60] sm:$0xff] %v861
      %883 = vst [vmem:[%s334 + $0x68] sm:$0xff] %v863
      %884 = vst [vmem:[%s334 + $0x70] sm:$0xff] %v866
      %885 = vst [vmem:[%s334 + $0x78] sm:$0xff] %v868
      %s886 = smul.u32 16, %s20
      %p887 = scmp.lt.s32.totalorder %s886, 31
      %s888 = scalar_select %p887, %s886, 31
      %s889 = smul.addr %s888, 8
      %s890 = scalar_lea.vmem %s9, %s889
      // Predicated region
      $region57: #{dqn_forward.1} parent=55 // pred_check
        %p891 = pneg %p232
      $region58: #{dqn_forward.1} parent=55 // pred_check_branch
        %893 = sbr.rel (%p891) target = $region60
      $region59: #{dqn_forward.1} parent=55 // pred_region
        %s894 = smul.u32 16, %s20
      $region60: #{dqn_forward.1} parent=55 // pred_fallthru
        _
    $region56: #{dqn_forward.1} parent=5 // pred_fallthru
      _
    %p895 = scmp.le.s32.totalorder 2, %s15
    // Predicated region
    $region61: #{dqn_forward.1} parent=5 // pred_check
      %p896 = pneg %p895
    $region62: #{dqn_forward.1} parent=5 // pred_check_branch
      %898 = sbr.rel (%p896) target = $region64
    $region63: #{dqn_forward.1} parent=5 // pred_region
      %s899 = ssub.s32 %s15, 2
      // Predicated region
      $region65: #{dqn_forward.1} parent=63 // pred_check
        %p900 = pneg %p238
      $region66: #{dqn_forward.1} parent=63 // pred_check_branch
        %902 = sbr.rel (%p900) target = $region68
      $region67: #{dqn_forward.1} parent=63 // pred_region
        %s903 = smul.u32 16, %s21
        %p904 = scmp.lt.s32.totalorder %s903, 31
        %s905 = scalar_select %p904, %s903, 31
        %s906 = smul.addr %s905, 8
        %s907 = scalar_lea.vmem %s9, %s906
      $region68: #{dqn_forward.1} parent=63 // pred_fallthru
        _
    $region64: #{dqn_forward.1} parent=5 // pred_fallthru
      _
  $region6: #{dqn_forward.1} parent=0 // loop_footer
    %s19 = sadd.s32 1, %s15
  $region7: #{dqn_forward.1} parent=0 // loop_footer_branch
    %14 = sbr.rel target = $region3
  $region8: #{dqn_forward.1} parent=0 // loop_exit
    _

</llo_original>
